<compile_context>
chip_gen: v7x
topology: tpu7x:2x2x1
jax: 0.10.0
libtpu: 0.0.40
codegen_flags: <defaults>
</compile_context>

<pallas_src>
import jax
import jax.numpy as jnp
from jax.experimental import pallas as pl
from jax.experimental.pallas import tpu as pltpu

LANE = 128   # TPU lane width (last-dim tiling unit)
SUBLANE = 8  # TPU sublane width (second-to-last-dim tiling unit)


def _round_up(n, m):
    return ((n + m - 1) // m) * m


def _pad_to(a, shape):
    pads = [(0, s - d) for d, s in zip(a.shape, shape)]
    return jnp.pad(a, pads)


def mlp_kernel(x_ref, w1_ref, b1_ref, w2_ref, b2_ref, w3_ref, b3_ref, out_ref):
    x = x_ref[...]           # [TM, in_f]  (in_f = 2)
    w1 = w1_ref[...]         # [8, Hp]     (rows >= in_f are zero padding)

    # fc1: K=2 contraction on the VPU as broadcast FMAs (no MXU round-trip for 2-deep K).
    h1 = b1_ref[...]         # [1, Hp] -> broadcasts over the batch tile
    for k in range(x_ref.shape[1]):                       # unrolled at trace time (in_f = 2)
        h1 = h1 + x[:, k:k + 1] * w1[k:k + 1, :]
    h1 = jnp.maximum(h1, 0.0)                             # relu, [TM, Hp]

    # fc2 on the MXU (Hp x Hp, zero-padded cols/rows contribute exactly 0).
    h2 = jnp.dot(h1, w2_ref[...],
                 preferred_element_type=jnp.float32,
                 precision=jax.lax.Precision.HIGHEST) + b2_ref[...]
    h2 = jnp.maximum(h2, 0.0)                             # relu, [TM, Hp]

    # fc3 with NARROW weights [Hp, C]: result is already [TM, C]; store only real columns.
    out = jnp.dot(h2, w3_ref[...],
                  preferred_element_type=jnp.float32,
                  precision=jax.lax.Precision.HIGHEST) + b3_ref[...]
    out_ref[...] = out.astype(out_ref.dtype)              # [TM, C] narrow store (C=2)


def pad_params(params):
    """One-time padding of weights/biases (hoisted out of the per-call forward path)."""
    w1, b1 = params["w1"], params["b1"]
    w2, b2 = params["w2"], params["b2"]
    w3, b3 = params["w3"], params["b3"]
    H = w1.shape[1]
    C = w3.shape[1]
    Hp = _round_up(H, LANE)                               # hidden padded to a full lane width
    return {
        "w1": _pad_to(w1, (SUBLANE, Hp)),                 # [8, Hp]
        "b1": _pad_to(b1.reshape(1, -1), (1, Hp)),        # [1, Hp]
        "w2": _pad_to(w2, (Hp, Hp)),                      # [Hp, Hp]
        "b2": _pad_to(b2.reshape(1, -1), (1, Hp)),        # [1, Hp]
        "w3": _pad_to(w3, (Hp, C)),                       # [Hp, C]  (output kept narrow)
        "b3": b3.reshape(1, -1),                          # [1, C]
    }


def _choose_tiling(B, tm_max):
    """Pick (TM, Bp): minimal batch padding, >=2 grid steps when possible (v7x 2nd TC)."""
    Bp = _round_up(B, SUBLANE)
    steps = max(pl.cdiv(Bp, tm_max), min(2, Bp // SUBLANE))
    TM = _round_up(pl.cdiv(Bp, steps), SUBLANE)
    Bp = _round_up(Bp, TM)
    return TM, Bp


def simple_mlp_forward(x, padded_params, *, tm_max=4096):
    """x: [B, 2] float32. padded_params: output of pad_params()."""
    B, in_f = x.shape
    C = padded_params["w3"].shape[1]

    TM, Bp = _choose_tiling(B, tm_max)
    xp = x if Bp == B else _pad_to(x, (Bp, in_f))
    grid = (Bp // TM,)

    # Tiny weights/biases stay VMEM-resident across grid steps (constant index_map).
    resident = lambda a: pl.BlockSpec(a.shape, lambda i: (0,) * a.ndim)

    out = pl.pallas_call(
        mlp_kernel,
        out_shape=jax.ShapeDtypeStruct((Bp, C), jnp.float32),   # narrow output: no 128-pad
        grid=grid,
        in_specs=[
            pl.BlockSpec((TM, in_f), lambda i: (i, 0)),          # x: tiled over batch
            resident(padded_params["w1"]), resident(padded_params["b1"]),
            resident(padded_params["w2"]), resident(padded_params["b2"]),
            resident(padded_params["w3"]), resident(padded_params["b3"]),
        ],
        out_specs=pl.BlockSpec((TM, C), lambda i: (i, 0)),
        compiler_params=pltpu.CompilerParams(
            dimension_semantics=("parallel",),                   # shard batch tiles across TCs
            vmem_limit_bytes=32 * 1024 * 1024,
        ),
    )(xp, padded_params["w1"], padded_params["b1"],
      padded_params["w2"], padded_params["b2"],
      padded_params["w3"], padded_params["b3"])

    # Only trims (at most 7) batch-pad rows of a narrow (Bp, C) array; skipped when B % 8 == 0.
    return out if Bp == B else out[:B]


def init_params(key, in_features=2, hidden_size=32, classes=2):
    """Deterministic init matching nn.Linear shapes (stored transposed as [in, out])."""
    ks = jax.random.split(key, 6)

    def lin(kw, kb, fan_in, fan_out):
        bound = 1.0 / jnp.sqrt(fan_in)
        w = jax.random.uniform(kw, (fan_in, fan_out), jnp.float32, -bound, bound)
        b = jax.random.uniform(kb, (fan_out,), jnp.float32, -bound, bound)
        return w, b

    w1, b1 = lin(ks[0], ks[1], in_features, hidden_size)
    w2, b2 = lin(ks[2], ks[3], hidden_size, hidden_size)
    w3, b3 = lin(ks[4], ks[5], hidden_size, classes)
    return {"w1": w1, "b1": b1, "w2": w2, "b2": b2, "w3": w3, "b3": b3}


if __name__ == "__main__":
    key = jax.random.PRNGKey(0)
    k_params, k_x = jax.random.split(key)

    params = init_params(k_params, in_features=2, hidden_size=32, classes=2)
    padded = pad_params(params)                              # one-time padding (hoisted)
    x = jax.random.normal(k_x, (8, 2), dtype=jnp.float32)    # batch=8, 2 input features

    out = simple_mlp_forward(x, padded)
    out = jax.block_until_ready(out)

    # Reference check in plain JAX (same math, no kernel, no padding).
    def ref(x, p):
        h1 = jnp.maximum(x @ p["w1"] + p["b1"], 0.0)
        h2 = jnp.maximum(h1 @ p["w2"] + p["b2"], 0.0)
        return h2 @ p["w3"] + p["b3"]

    expected = ref(x, params)
    assert out.shape == (8, 2)
    assert jnp.allclose(out, expected, atol=1e-5, rtol=1e-5)

    print("KERNEL_OK")
</pallas_src>

<mosaic_0001>
module attributes {stable_mosaic.version = 11 : i64} {
  func.func @mlp_kernel(%arg0: i32, %arg1: memref<8x2xf32, #tpu.memory_space<vmem>>, %arg2: memref<8x128xf32, #tpu.memory_space<vmem>>, %arg3: memref<1x128xf32, #tpu.memory_space<vmem>>, %arg4: memref<128x128xf32, #tpu.memory_space<vmem>>, %arg5: memref<1x128xf32, #tpu.memory_space<vmem>>, %arg6: memref<128x2xf32, #tpu.memory_space<vmem>>, %arg7: memref<1x2xf32, #tpu.memory_space<vmem>>, %arg8: memref<8x2xf32, #tpu.memory_space<vmem>>) attributes {dimension_semantics = [#tpu.dimension_semantics<parallel>], iteration_bounds = array<i64: 1>, scalar_prefetch = 0 : i64, scratch_operands = 0 : i64, tpu.core_type = #tpu.core_type<tc>, window_params = [{transform_indices = @transform_0, window_bounds = array<i64: 8, 2>}, {pipeline_mode = #tpu.pipeline_mode<synchronous>, transform_indices = @transform_1, window_bounds = array<i64: 8, 128>}, {pipeline_mode = #tpu.pipeline_mode<synchronous>, transform_indices = @transform_2, window_bounds = array<i64: 1, 128>}, {pipeline_mode = #tpu.pipeline_mode<synchronous>, transform_indices = @transform_3, window_bounds = array<i64: 128, 128>}, {pipeline_mode = #tpu.pipeline_mode<synchronous>, transform_indices = @transform_4, window_bounds = array<i64: 1, 128>}, {pipeline_mode = #tpu.pipeline_mode<synchronous>, transform_indices = @transform_5, window_bounds = array<i64: 128, 2>}, {pipeline_mode = #tpu.pipeline_mode<synchronous>, transform_indices = @transform_6, window_bounds = array<i64: 1, 2>}, {transform_indices = @transform_7, window_bounds = array<i64: 8, 2>}]} {
    %c0 = arith.constant 0 : index
    %c0_0 = arith.constant 0 : index
    %0 = vector.load %arg1[%c0, %c0_0] : memref<8x2xf32, #tpu.memory_space<vmem>>, vector<8x2xf32>
    %c0_1 = arith.constant 0 : index
    %c0_2 = arith.constant 0 : index
    %1 = vector.load %arg2[%c0_1, %c0_2] : memref<8x128xf32, #tpu.memory_space<vmem>>, vector<8x128xf32>
    %c0_3 = arith.constant 0 : index
    %c0_4 = arith.constant 0 : index
    %2 = vector.load %arg3[%c0_3, %c0_4] : memref<1x128xf32, #tpu.memory_space<vmem>>, vector<1x128xf32>
    %3 = vector.extract_strided_slice %0 {offsets = [0, 0], sizes = [8, 1], strides = [1, 1]} : vector<8x2xf32> to vector<8x1xf32>
    %4 = vector.extract_strided_slice %1 {offsets = [0, 0], sizes = [1, 128], strides = [1, 1]} : vector<8x128xf32> to vector<1x128xf32>
    %5 = vector.broadcast %3 : vector<8x1xf32> to vector<8x128xf32>
    %6 = vector.broadcast %4 : vector<1x128xf32> to vector<8x128xf32>
    %7 = arith.mulf %5, %6 : vector<8x128xf32>
    %8 = vector.broadcast %2 : vector<1x128xf32> to vector<8x128xf32>
    %9 = arith.addf %8, %7 : vector<8x128xf32>
    %10 = vector.extract_strided_slice %0 {offsets = [0, 1], sizes = [8, 1], strides = [1, 1]} : vector<8x2xf32> to vector<8x1xf32>
    %11 = vector.extract_strided_slice %1 {offsets = [1, 0], sizes = [1, 128], strides = [1, 1]} : vector<8x128xf32> to vector<1x128xf32>
    %12 = vector.broadcast %10 : vector<8x1xf32> to vector<8x128xf32>
    %13 = vector.broadcast %11 : vector<1x128xf32> to vector<8x128xf32>
    %14 = arith.mulf %12, %13 : vector<8x128xf32>
    %15 = arith.addf %9, %14 : vector<8x128xf32>
    %cst = arith.constant 0.000000e+00 : f32
    %16 = vector.broadcast %cst : f32 to vector<8x128xf32>
    %17 = arith.maximumf %15, %16 : vector<8x128xf32>
    %c0_5 = arith.constant 0 : index
    %c0_6 = arith.constant 0 : index
    %18 = vector.load %arg4[%c0_5, %c0_6] : memref<128x128xf32, #tpu.memory_space<vmem>>, vector<128x128xf32>
    %cst_7 = arith.constant dense<0.000000e+00> : vector<8x128xf32>
    %19 = tpu.matmul %17, %18, %cst_7 {dimension_numbers = #tpu.dot_dimension_numbers<[1], [0], [0], [1], [0, 0, 1, 1], [], []>, precision = #tpu.contract_precision<fp32>} : vector<8x128xf32>, vector<128x128xf32>, vector<8x128xf32> -> vector<8x128xf32>
    %c0_8 = arith.constant 0 : index
    %c0_9 = arith.constant 0 : index
    %20 = vector.load %arg5[%c0_8, %c0_9] : memref<1x128xf32, #tpu.memory_space<vmem>>, vector<1x128xf32>
    %21 = vector.broadcast %20 : vector<1x128xf32> to vector<8x128xf32>
    %22 = arith.addf %19, %21 : vector<8x128xf32>
    %cst_10 = arith.constant 0.000000e+00 : f32
    %23 = vector.broadcast %cst_10 : f32 to vector<8x128xf32>
    %24 = arith.maximumf %22, %23 : vector<8x128xf32>
    %c0_11 = arith.constant 0 : index
    %c0_12 = arith.constant 0 : index
    %25 = vector.load %arg6[%c0_11, %c0_12] : memref<128x2xf32, #tpu.memory_space<vmem>>, vector<128x2xf32>
    %cst_13 = arith.constant dense<0.000000e+00> : vector<8x2xf32>
    %26 = tpu.matmul %24, %25, %cst_13 {dimension_numbers = #tpu.dot_dimension_numbers<[1], [0], [0], [1], [0, 0, 1, 1], [], []>, precision = #tpu.contract_precision<fp32>} : vector<8x128xf32>, vector<128x2xf32>, vector<8x2xf32> -> vector<8x2xf32>
    %c0_14 = arith.constant 0 : index
    %c0_15 = arith.constant 0 : index
    %27 = vector.load %arg7[%c0_14, %c0_15] : memref<1x2xf32, #tpu.memory_space<vmem>>, vector<1x2xf32>
    %28 = vector.broadcast %27 : vector<1x2xf32> to vector<8x2xf32>
    %29 = arith.addf %26, %28 : vector<8x2xf32>
    %c0_16 = arith.constant 0 : index
    %c0_17 = arith.constant 0 : index
    %30 = vector.load %arg8[%c0_16, %c0_17] : memref<8x2xf32, #tpu.memory_space<vmem>>, vector<8x2xf32>
    tpu.vector_store %arg8[%c0_16, %c0_17], %29 {strides = array<i32>} : memref<8x2xf32, #tpu.memory_space<vmem>>, vector<8x2xf32>,
    return
  }
  func.func @transform_0(%arg0: i32) -> (i32, i32) {
    %c0_i32 = arith.constant 0 : i32
    %c0_i32_0 = arith.constant 0 : i32
    return %arg0, %c0_i32 : i32, i32
  }
  func.func @transform_1(%arg0: i32) -> (i32, i32) {
    %c0_i32 = arith.constant 0 : i32
    %c0_i32_0 = arith.constant 0 : i32
    %c0_i32_1 = arith.constant 0 : i32
    return %c0_i32, %c0_i32_0 : i32, i32
  }
  func.func @transform_2(%arg0: i32) -> (i32, i32) {
    %c0_i32 = arith.constant 0 : i32
    %c0_i32_0 = arith.constant 0 : i32
    %c0_i32_1 = arith.constant 0 : i32
    return %c0_i32, %c0_i32_0 : i32, i32
  }
  func.func @transform_3(%arg0: i32) -> (i32, i32) {
    %c0_i32 = arith.constant 0 : i32
    %c0_i32_0 = arith.constant 0 : i32
    %c0_i32_1 = arith.constant 0 : i32
    return %c0_i32, %c0_i32_0 : i32, i32
  }
  func.func @transform_4(%arg0: i32) -> (i32, i32) {
    %c0_i32 = arith.constant 0 : i32
    %c0_i32_0 = arith.constant 0 : i32
    %c0_i32_1 = arith.constant 0 : i32
    return %c0_i32, %c0_i32_0 : i32, i32
  }
  func.func @transform_5(%arg0: i32) -> (i32, i32) {
    %c0_i32 = arith.constant 0 : i32
    %c0_i32_0 = arith.constant 0 : i32
    %c0_i32_1 = arith.constant 0 : i32
    return %c0_i32, %c0_i32_0 : i32, i32
  }
  func.func @transform_6(%arg0: i32) -> (i32, i32) {
    %c0_i32 = arith.constant 0 : i32
    %c0_i32_0 = arith.constant 0 : i32
    %c0_i32_1 = arith.constant 0 : i32
    return %c0_i32, %c0_i32_0 : i32, i32
  }
  func.func @transform_7(%arg0: i32) -> (i32, i32) {
    %c0_i32 = arith.constant 0 : i32
    %c0_i32_0 = arith.constant 0 : i32
    return %arg0, %c0_i32 : i32, i32
  }
}

</mosaic_0001>

<llo_original>
// kernel: tpu_custom_call.1
$region0: #{tpu_custom_call.1}
  #allocation0 [shape = 'u32[]', space=smem, size = 0x4, offset = 0x4, fixed_abs, tag = 'smem constant byte address 0x4 - core index']
  #allocation1 [shape = 'u32[144,128]{1,0:T(1,128)}', space=vmem, size = 0x12000, scoped, tag = 'internal scratch']
  %s0 = inlined_call_operand.vmem [shape: f32[8,2], index: 0, kind: input, shape index: {}]
  %s1 = inlined_call_operand.vmem [shape: f32[8,128], index: 1, kind: input, shape index: {}]
  %s2 = inlined_call_operand.vmem [shape: f32[1,128], index: 2, kind: input, shape index: {}]
  %s3 = inlined_call_operand.vmem [shape: f32[128,128], index: 3, kind: input, shape index: {}]
  %s4 = inlined_call_operand.vmem [shape: f32[1,128], index: 4, kind: input, shape index: {}]
  %s5 = inlined_call_operand.vmem [shape: f32[128,2], index: 5, kind: input, shape index: {}]
  %s6 = inlined_call_operand.vmem [shape: f32[1,2], index: 6, kind: input, shape index: {}]
  %s7 = inlined_call_operand.vmem [shape: f32[8,2], index: 7, kind: output, shape index: {}]
  %s8 = sld [smem:[#allocation0]]
  $region38: #{tpu_custom_call.1} parent=0
    _
  %s10 = ssub.s32 1, %s8
  %s11 = scalar_select 0, %s10, %s8
  // Predicated region
  $region2: #{tpu_custom_call.1} parent=0 // pred_check
    _
  $region3: #{tpu_custom_call.1} parent=0 // pred_check_branch
    %13 = sbr.rel (0) target = $region5
  $region4: #{tpu_custom_call.1} parent=0 // pred_region
    _
  $region5: #{tpu_custom_call.1} parent=0 // pred_fallthru
    _
  // Predicated region
  $region6: #{tpu_custom_call.1} parent=0 // pred_check
    _
  $region7: #{tpu_custom_call.1} parent=0 // pred_check_branch
    %15 = sbr.rel (0) target = $region9
  $region8: #{tpu_custom_call.1} parent=0 // pred_region
    _
  $region9: #{tpu_custom_call.1} parent=0 // pred_fallthru
    _
  // Predicated region
  $region10: #{tpu_custom_call.1} parent=0 // pred_check
    _
  $region11: #{tpu_custom_call.1} parent=0 // pred_check_branch
    %17 = sbr.rel (0) target = $region13
  $region12: #{tpu_custom_call.1} parent=0 // pred_region
    _
  $region13: #{tpu_custom_call.1} parent=0 // pred_fallthru
    _
  // Predicated region
  $region14: #{tpu_custom_call.1} parent=0 // pred_check
    _
  $region15: #{tpu_custom_call.1} parent=0 // pred_check_branch
    %19 = sbr.rel (0) target = $region17
  $region16: #{tpu_custom_call.1} parent=0 // pred_region
    _
  $region17: #{tpu_custom_call.1} parent=0 // pred_fallthru
    _
  // Predicated region
  $region18: #{tpu_custom_call.1} parent=0 // pred_check
    _
  $region19: #{tpu_custom_call.1} parent=0 // pred_check_branch
    %21 = sbr.rel (0) target = $region21
  $region20: #{tpu_custom_call.1} parent=0 // pred_region
    _
  $region21: #{tpu_custom_call.1} parent=0 // pred_fallthru
    _
  // Predicated region
  $region22: #{tpu_custom_call.1} parent=0 // pred_check
    _
  $region23: #{tpu_custom_call.1} parent=0 // pred_check_branch
    %23 = sbr.rel (0) target = $region25
  $region24: #{tpu_custom_call.1} parent=0 // pred_region
    _
  $region25: #{tpu_custom_call.1} parent=0 // pred_fallthru
    _
  // Predicated region
  $region26: #{tpu_custom_call.1} parent=0 // pred_check
    _
  $region27: #{tpu_custom_call.1} parent=0 // pred_check_branch
    %25 = sbr.rel (0) target = $region29
  $region28: #{tpu_custom_call.1} parent=0 // pred_region
    _
  $region29: #{tpu_custom_call.1} parent=0 // pred_fallthru
    _
  %v26 = vld [vmem:[%s0] sm:$0xff]
  %v27 = vld [vmem:[%s1] sm:$0xff]
  %v28 = vld [vmem:[%s2] sm:$0x1]
  %30 = vset.pattern.permute.xlu0 0
  %31 = vperm.xlu0 %30, %v26
  %v32 = vpop.permute.xlu0 %31
  %v34 = vlaneseq
  %v35 = vshrl.u32 %v34, 7
  %v36 = vsub.s32 0, %v35
  %v37 = vrot.slane %v27, %v36
  %v38 = vmul.f32 %v32, %v37
  %v40 = vlaneseq
  %v41 = vshrl.u32 %v40, 7
  %v42 = vsub.s32 0, %v41
  %v43 = vrot.slane %v28, %v42
  %v45 = vadd.f32 %v43, %v38
  %46 = vset.pattern.permute.xlu0 1
  %47 = vperm.xlu0 %46, %v26
  %v48 = vpop.permute.xlu0 %47
  %v50 = vlaneseq
  %v51 = vshrl.u32 %v50, 7
  %v52 = vsub.s32 1, %v51
  %v53 = vrot.slane %v27, %v52
  %v54 = vmul.f32 %v48, %v53
  %v55 = vadd.f32 %v45, %v54
  %v56 = vmax.f32 %v55, 0.0
  %v57 = vld [vmem:[%s3] sm:$0xff]
  %v58 = vld [vmem:[%s3 + $0x8] sm:$0xff]
  %v59 = vld [vmem:[%s3 + $0x10] sm:$0xff]
  %v60 = vld [vmem:[%s3 + $0x18] sm:$0xff]
  %v61 = vld [vmem:[%s3 + $0x20] sm:$0xff]
  %v62 = vld [vmem:[%s3 + $0x28] sm:$0xff]
  %v63 = vld [vmem:[%s3 + $0x30] sm:$0xff]
  %v64 = vld [vmem:[%s3 + $0x38] sm:$0xff]
  %v65 = vld [vmem:[%s3 + $0x40] sm:$0xff]
  %v66 = vld [vmem:[%s3 + $0x48] sm:$0xff]
  %v67 = vld [vmem:[%s3 + $0x50] sm:$0xff]
  %v68 = vld [vmem:[%s3 + $0x58] sm:$0xff]
  %v69 = vld [vmem:[%s3 + $0x60] sm:$0xff]
  %v70 = vld [vmem:[%s3 + $0x68] sm:$0xff]
  %v71 = vld [vmem:[%s3 + $0x70] sm:$0xff]
  %v72 = vld [vmem:[%s3 + $0x78] sm:$0xff]
  %v73 = vld [vmem:[%s4] sm:$0x1]
  %v75 = vlaneseq
  %v76 = vshrl.u32 %v75, 7
  %v77 = vsub.s32 0, %v76
  %v78 = vrot.slane %v73, %v77
  %80 = vmatprep.subr.mxu0 0.0
  %v81 = vand.u32 %v57, 4294901760
  %82 = vmatpush1.msra.mxu0 %v81
  %83 = vmatprep.subr.mxu0 0.0
  %v84 = vand.u32 %v58, 4294901760
  %85 = vmatpush1.msra.mxu0 %v84
  %86 = vmatprep.subr.mxu0 0.0
  %v87 = vand.u32 %v59, 4294901760
  %88 = vmatpush1.msra.mxu0 %v87
  %89 = vmatprep.subr.mxu0 0.0
  %v90 = vand.u32 %v60, 4294901760
  %91 = vmatpush1.msra.mxu0 %v90
  %92 = vmatprep.subr.mxu0 0.0
  %v93 = vand.u32 %v61, 4294901760
  %94 = vmatpush1.msra.mxu0 %v93
  %95 = vmatprep.subr.mxu0 0.0
  %v96 = vand.u32 %v62, 4294901760
  %97 = vmatpush1.msra.mxu0 %v96
  %98 = vmatprep.subr.mxu0 0.0
  %v99 = vand.u32 %v63, 4294901760
  %100 = vmatpush1.msra.mxu0 %v99
  %101 = vmatprep.subr.mxu0 0.0
  %v102 = vand.u32 %v64, 4294901760
  %103 = vmatpush1.msra.mxu0 %v102
  %104 = vmatprep.subr.mxu0 0.0
  %v105 = vand.u32 %v65, 4294901760
  %106 = vmatpush1.msra.mxu0 %v105
  %107 = vmatprep.subr.mxu0 0.0
  %v108 = vand.u32 %v66, 4294901760
  %109 = vmatpush1.msra.mxu0 %v108
  %110 = vmatprep.subr.mxu0 0.0
  %v111 = vand.u32 %v67, 4294901760
  %112 = vmatpush1.msra.mxu0 %v111
  %113 = vmatprep.subr.mxu0 0.0
  %v114 = vand.u32 %v68, 4294901760
  %115 = vmatpush1.msra.mxu0 %v114
  %116 = vmatprep.subr.mxu0 0.0
  %v117 = vand.u32 %v69, 4294901760
  %118 = vmatpush1.msra.mxu0 %v117
  %119 = vmatprep.subr.mxu0 0.0
  %v120 = vand.u32 %v70, 4294901760
  %121 = vmatpush1.msra.mxu0 %v120
  %122 = vmatprep.subr.mxu0 0.0
  %v123 = vand.u32 %v71, 4294901760
  %124 = vmatpush1.msra.mxu0 %v123
  %125 = vmatprep.subr.mxu0 0.0
  %v126 = vand.u32 %v72, 4294901760
  %127 = vmatpush1.msra.mxu0 %v126
  %128 = vmatprep.subr.mxu0 0.0
  %129 = vmatpush1.msra.mxu0 0.0
  %130 = vmatprep.subr.mxu0 0.0
  %131 = vmatpush1.msra.mxu0 0.0
  %132 = vmatprep.subr.mxu0 0.0
  %133 = vmatpush1.msra.mxu0 0.0
  %134 = vmatprep.subr.mxu0 0.0
  %135 = vmatpush1.msra.mxu0 0.0
  %136 = vmatprep.subr.mxu0 0.0
  %137 = vmatpush1.msra.mxu0 0.0
  %138 = vmatprep.subr.mxu0 0.0
  %139 = vmatpush1.msra.mxu0 0.0
  %140 = vmatprep.subr.mxu0 0.0
  %141 = vmatpush1.msra.mxu0 0.0
  %142 = vmatprep.subr.mxu0 0.0
  %143 = vmatpush1.msra.mxu0 0.0
  %144 = vmatprep.subr.mxu0 0.0
  %145 = vmatpush1.msra.mxu0 0.0
  %146 = vmatprep.subr.mxu0 0.0
  %147 = vmatpush1.msra.mxu0 0.0
  %148 = vmatprep.subr.mxu0 0.0
  %149 = vmatpush1.msra.mxu0 0.0
  %150 = vmatprep.subr.mxu0 0.0
  %151 = vmatpush1.msra.mxu0 0.0
  %152 = vmatprep.subr.mxu0 0.0
  %153 = vmatpush1.msra.mxu0 0.0
  %154 = vmatprep.subr.mxu0 0.0
  %155 = vmatpush1.msra.mxu0 0.0
  %156 = vmatprep.subr.mxu0 0.0
  %157 = vmatpush1.msra.mxu0 0.0
  %158 = vmatprep.subr.mxu0 0.0
  %159 = vmatpush1.msra.mxu0 0.0
  %160 = vmatprep.mubr.f32.mxu0 0.0
  %v161 = vand.u32 %v56, 4294901760
  %v162 = vsub.f32 %v56, %v161
  %v163 = vand.u32 %v162, 4294901760
  %v164 = vsub.f32 %v162, %v163
  %v165 = vand.u32 %v164, 4294901760
  %166 = vmatmul.mubr.f32.gmra.mrb[0].mxu0 %v165
  %v167 = vpop.f32.mrb[0].mxu0
  %v168 = vadd.f32 %v78, %v167
  %v169 = vpop.f32.mrb[0].mxu0
  %170 = vdwg.mxu0
  %171 = vmatprep.subr.mxu0 0.0
  %v172 = vand.u32 %v57, 4294901760
  %v173 = vsub.f32 %v57, %v172
  %v174 = vand.u32 %v173, 4294901760
  %v175 = vsub.f32 %v173, %v174
  %v176 = vand.u32 %v175, 4294901760
  %177 = vmatpush1.msra.mxu0 %v176
  %178 = vmatprep.subr.mxu0 0.0
  %v179 = vand.u32 %v58, 4294901760
  %v180 = vsub.f32 %v58, %v179
  %v181 = vand.u32 %v180, 4294901760
  %v182 = vsub.f32 %v180, %v181
  %v183 = vand.u32 %v182, 4294901760
  %184 = vmatpush1.msra.mxu0 %v183
  %185 = vmatprep.subr.mxu0 0.0
  %v186 = vand.u32 %v59, 4294901760
  %v187 = vsub.f32 %v59, %v186
  %v188 = vand.u32 %v187, 4294901760
  %v189 = vsub.f32 %v187, %v188
  %v190 = vand.u32 %v189, 4294901760
  %191 = vmatpush1.msra.mxu0 %v190
  %192 = vmatprep.subr.mxu0 0.0
  %v193 = vand.u32 %v60, 4294901760
  %v194 = vsub.f32 %v60, %v193
  %v195 = vand.u32 %v194, 4294901760
  %v196 = vsub.f32 %v194, %v195
  %v197 = vand.u32 %v196, 4294901760
  %198 = vmatpush1.msra.mxu0 %v197
  %199 = vmatprep.subr.mxu0 0.0
  %v200 = vand.u32 %v61, 4294901760
  %v201 = vsub.f32 %v61, %v200
  %v202 = vand.u32 %v201, 4294901760
  %v203 = vsub.f32 %v201, %v202
  %v204 = vand.u32 %v203, 4294901760
  %205 = vmatpush1.msra.mxu0 %v204
  %206 = vmatprep.subr.mxu0 0.0
  %v207 = vand.u32 %v62, 4294901760
  %v208 = vsub.f32 %v62, %v207
  %v209 = vand.u32 %v208, 4294901760
  %v210 = vsub.f32 %v208, %v209
  %v211 = vand.u32 %v210, 4294901760
  %212 = vmatpush1.msra.mxu0 %v211
  %213 = vmatprep.subr.mxu0 0.0
  %v214 = vand.u32 %v63, 4294901760
  %v215 = vsub.f32 %v63, %v214
  %v216 = vand.u32 %v215, 4294901760
  %v217 = vsub.f32 %v215, %v216
  %v218 = vand.u32 %v217, 4294901760
  %219 = vmatpush1.msra.mxu0 %v218
  %220 = vmatprep.subr.mxu0 0.0
  %v221 = vand.u32 %v64, 4294901760
  %v222 = vsub.f32 %v64, %v221
  %v223 = vand.u32 %v222, 4294901760
  %v224 = vsub.f32 %v222, %v223
  %v225 = vand.u32 %v224, 4294901760
  %226 = vmatpush1.msra.mxu0 %v225
  %227 = vmatprep.subr.mxu0 0.0
  %v228 = vand.u32 %v65, 4294901760
  %v229 = vsub.f32 %v65, %v228
  %v230 = vand.u32 %v229, 4294901760
  %v231 = vsub.f32 %v229, %v230
  %v232 = vand.u32 %v231, 4294901760
  %233 = vmatpush1.msra.mxu0 %v232
  %234 = vmatprep.subr.mxu0 0.0
  %v235 = vand.u32 %v66, 4294901760
  %v236 = vsub.f32 %v66, %v235
  %v237 = vand.u32 %v236, 4294901760
  %v238 = vsub.f32 %v236, %v237
  %v239 = vand.u32 %v238, 4294901760
  %240 = vmatpush1.msra.mxu0 %v239
  %241 = vmatprep.subr.mxu0 0.0
  %v242 = vand.u32 %v67, 4294901760
  %v243 = vsub.f32 %v67, %v242
  %v244 = vand.u32 %v243, 4294901760
  %v245 = vsub.f32 %v243, %v244
  %v246 = vand.u32 %v245, 4294901760
  %247 = vmatpush1.msra.mxu0 %v246
  %248 = vmatprep.subr.mxu0 0.0
  %v249 = vand.u32 %v68, 4294901760
  %v250 = vsub.f32 %v68, %v249
  %v251 = vand.u32 %v250, 4294901760
  %v252 = vsub.f32 %v250, %v251
  %v253 = vand.u32 %v252, 4294901760
  %254 = vmatpush1.msra.mxu0 %v253
  %255 = vmatprep.subr.mxu0 0.0
  %v256 = vand.u32 %v69, 4294901760
  %v257 = vsub.f32 %v69, %v256
  %v258 = vand.u32 %v257, 4294901760
  %v259 = vsub.f32 %v257, %v258
  %v260 = vand.u32 %v259, 4294901760
  %261 = vmatpush1.msra.mxu0 %v260
  %262 = vmatprep.subr.mxu0 0.0
  %v263 = vand.u32 %v70, 4294901760
  %v264 = vsub.f32 %v70, %v263
  %v265 = vand.u32 %v264, 4294901760
  %v266 = vsub.f32 %v264, %v265
  %v267 = vand.u32 %v266, 4294901760
  %268 = vmatpush1.msra.mxu0 %v267
  %269 = vmatprep.subr.mxu0 0.0
  %v270 = vand.u32 %v71, 4294901760
  %v271 = vsub.f32 %v71, %v270
  %v272 = vand.u32 %v271, 4294901760
  %v273 = vsub.f32 %v271, %v272
  %v274 = vand.u32 %v273, 4294901760
  %275 = vmatpush1.msra.mxu0 %v274
  %276 = vmatprep.subr.mxu0 0.0
  %v277 = vand.u32 %v72, 4294901760
  %v278 = vsub.f32 %v72, %v277
  %v279 = vand.u32 %v278, 4294901760
  %v280 = vsub.f32 %v278, %v279
  %v281 = vand.u32 %v280, 4294901760
  %282 = vmatpush1.msra.mxu0 %v281
  %283 = vmatprep.subr.mxu0 0.0
  %284 = vmatpush1.msra.mxu0 0.0
  %285 = vmatprep.subr.mxu0 0.0
  %286 = vmatpush1.msra.mxu0 0.0
  %287 = vmatprep.subr.mxu0 0.0
  %288 = vmatpush1.msra.mxu0 0.0
  %289 = vmatprep.subr.mxu0 0.0
  %290 = vmatpush1.msra.mxu0 0.0
  %291 = vmatprep.subr.mxu0 0.0
  %292 = vmatpush1.msra.mxu0 0.0
  %293 = vmatprep.subr.mxu0 0.0
  %294 = vmatpush1.msra.mxu0 0.0
  %295 = vmatprep.subr.mxu0 0.0
  %296 = vmatpush1.msra.mxu0 0.0
  %297 = vmatprep.subr.mxu0 0.0
  %298 = vmatpush1.msra.mxu0 0.0
  %299 = vmatprep.subr.mxu0 0.0
  %300 = vmatpush1.msra.mxu0 0.0
  %301 = vmatprep.subr.mxu0 0.0
  %302 = vmatpush1.msra.mxu0 0.0
  %303 = vmatprep.subr.mxu0 0.0
  %304 = vmatpush1.msra.mxu0 0.0
  %305 = vmatprep.subr.mxu0 0.0
  %306 = vmatpush1.msra.mxu0 0.0
  %307 = vmatprep.subr.mxu0 0.0
  %308 = vmatpush1.msra.mxu0 0.0
  %309 = vmatprep.subr.mxu0 0.0
  %310 = vmatpush1.msra.mxu0 0.0
  %311 = vmatprep.subr.mxu0 0.0
  %312 = vmatpush1.msra.mxu0 0.0
  %313 = vmatprep.subr.mxu0 0.0
  %314 = vmatpush1.msra.mxu0 0.0
  %315 = vmatprep.mubr.f32.mxu0 0.0
  %v316 = vand.u32 %v56, 4294901760
  %317 = vmatmul.mubr.f32.gmra.mrb[0].mxu0 %v316
  %v318 = vpop.f32.mrb[0].mxu0
  %v319 = vadd.f32 %v168, %v318
  %v320 = vpop.f32.mrb[0].mxu0
  %321 = vdwg.mxu0
  %322 = vmatprep.subr.mxu0 0.0
  %v323 = vand.u32 %v57, 4294901760
  %v324 = vsub.f32 %v57, %v323
  %325 = vmatpush1.msra.mxu0 %v324
  %326 = vmatprep.subr.mxu0 0.0
  %v327 = vand.u32 %v58, 4294901760
  %v328 = vsub.f32 %v58, %v327
  %329 = vmatpush1.msra.mxu0 %v328
  %330 = vmatprep.subr.mxu0 0.0
  %v331 = vand.u32 %v59, 4294901760
  %v332 = vsub.f32 %v59, %v331
  %333 = vmatpush1.msra.mxu0 %v332
  %334 = vmatprep.subr.mxu0 0.0
  %v335 = vand.u32 %v60, 4294901760
  %v336 = vsub.f32 %v60, %v335
  %337 = vmatpush1.msra.mxu0 %v336
  %338 = vmatprep.subr.mxu0 0.0
  %v339 = vand.u32 %v61, 4294901760
  %v340 = vsub.f32 %v61, %v339
  %341 = vmatpush1.msra.mxu0 %v340
  %342 = vmatprep.subr.mxu0 0.0
  %v343 = vand.u32 %v62, 4294901760
  %v344 = vsub.f32 %v62, %v343
  %345 = vmatpush1.msra.mxu0 %v344
  %346 = vmatprep.subr.mxu0 0.0
  %v347 = vand.u32 %v63, 4294901760
  %v348 = vsub.f32 %v63, %v347
  %349 = vmatpush1.msra.mxu0 %v348
  %350 = vmatprep.subr.mxu0 0.0
  %v351 = vand.u32 %v64, 4294901760
  %v352 = vsub.f32 %v64, %v351
  %353 = vmatpush1.msra.mxu0 %v352
  %354 = vmatprep.subr.mxu0 0.0
  %v355 = vand.u32 %v65, 4294901760
  %v356 = vsub.f32 %v65, %v355
  %357 = vmatpush1.msra.mxu0 %v356
  %358 = vmatprep.subr.mxu0 0.0
  %v359 = vand.u32 %v66, 4294901760
  %v360 = vsub.f32 %v66, %v359
  %361 = vmatpush1.msra.mxu0 %v360
  %362 = vmatprep.subr.mxu0 0.0
  %v363 = vand.u32 %v67, 4294901760
  %v364 = vsub.f32 %v67, %v363
  %365 = vmatpush1.msra.mxu0 %v364
  %366 = vmatprep.subr.mxu0 0.0
  %v367 = vand.u32 %v68, 4294901760
  %v368 = vsub.f32 %v68, %v367
  %369 = vmatpush1.msra.mxu0 %v368
  %370 = vmatprep.subr.mxu0 0.0
  %v371 = vand.u32 %v69, 4294901760
  %v372 = vsub.f32 %v69, %v371
  %373 = vmatpush1.msra.mxu0 %v372
  %374 = vmatprep.subr.mxu0 0.0
  %v375 = vand.u32 %v70, 4294901760
  %v376 = vsub.f32 %v70, %v375
  %377 = vmatpush1.msra.mxu0 %v376
  %378 = vmatprep.subr.mxu0 0.0
  %v379 = vand.u32 %v71, 4294901760
  %v380 = vsub.f32 %v71, %v379
  %381 = vmatpush1.msra.mxu0 %v380
  %382 = vmatprep.subr.mxu0 0.0
  %v383 = vand.u32 %v72, 4294901760
  %v384 = vsub.f32 %v72, %v383
  %385 = vmatpush1.msra.mxu0 %v384
  %386 = vmatprep.subr.mxu0 0.0
  %387 = vmatpush1.msra.mxu0 0.0
  %388 = vmatprep.subr.mxu0 0.0
  %389 = vmatpush1.msra.mxu0 0.0
  %390 = vmatprep.subr.mxu0 0.0
  %391 = vmatpush1.msra.mxu0 0.0
  %392 = vmatprep.subr.mxu0 0.0
  %393 = vmatpush1.msra.mxu0 0.0
  %394 = vmatprep.subr.mxu0 0.0
  %395 = vmatpush1.msra.mxu0 0.0
  %396 = vmatprep.subr.mxu0 0.0
  %397 = vmatpush1.msra.mxu0 0.0
  %398 = vmatprep.subr.mxu0 0.0
  %399 = vmatpush1.msra.mxu0 0.0
  %400 = vmatprep.subr.mxu0 0.0
  %401 = vmatpush1.msra.mxu0 0.0
  %402 = vmatprep.subr.mxu0 0.0
  %403 = vmatpush1.msra.mxu0 0.0
  %404 = vmatprep.subr.mxu0 0.0
  %405 = vmatpush1.msra.mxu0 0.0
  %406 = vmatprep.subr.mxu0 0.0
  %407 = vmatpush1.msra.mxu0 0.0
  %408 = vmatprep.subr.mxu0 0.0
  %409 = vmatpush1.msra.mxu0 0.0
  %410 = vmatprep.subr.mxu0 0.0
  %411 = vmatpush1.msra.mxu0 0.0
  %412 = vmatprep.subr.mxu0 0.0
  %413 = vmatpush1.msra.mxu0 0.0
  %414 = vmatprep.subr.mxu0 0.0
  %415 = vmatpush1.msra.mxu0 0.0
  %416 = vmatprep.subr.mxu0 0.0
  %417 = vmatpush1.msra.mxu0 0.0
  %418 = vmatprep.mubr.f32.mxu0 0.0
  %v419 = vand.u32 %v56, 4294901760
  %v420 = vsub.f32 %v56, %v419
  %421 = vmatmul.mubr.f32.gmra.mrb[0].mxu0 %v420
  %v422 = vpop.f32.mrb[0].mxu0
  %v423 = vadd.f32 %v319, %v422
  %v424 = vpop.f32.mrb[0].mxu0
  %425 = vdwg.mxu0
  %426 = vmatprep.subr.mxu0 0.0
  %v427 = vand.u32 %v57, 4294901760
  %428 = vmatpush1.msra.mxu0 %v427
  %429 = vmatprep.subr.mxu0 0.0
  %v430 = vand.u32 %v58, 4294901760
  %431 = vmatpush1.msra.mxu0 %v430
  %432 = vmatprep.subr.mxu0 0.0
  %v433 = vand.u32 %v59, 4294901760
  %434 = vmatpush1.msra.mxu0 %v433
  %435 = vmatprep.subr.mxu0 0.0
  %v436 = vand.u32 %v60, 4294901760
  %437 = vmatpush1.msra.mxu0 %v436
  %438 = vmatprep.subr.mxu0 0.0
  %v439 = vand.u32 %v61, 4294901760
  %440 = vmatpush1.msra.mxu0 %v439
  %441 = vmatprep.subr.mxu0 0.0
  %v442 = vand.u32 %v62, 4294901760
  %443 = vmatpush1.msra.mxu0 %v442
  %444 = vmatprep.subr.mxu0 0.0
  %v445 = vand.u32 %v63, 4294901760
  %446 = vmatpush1.msra.mxu0 %v445
  %447 = vmatprep.subr.mxu0 0.0
  %v448 = vand.u32 %v64, 4294901760
  %449 = vmatpush1.msra.mxu0 %v448
  %450 = vmatprep.subr.mxu0 0.0
  %v451 = vand.u32 %v65, 4294901760
  %452 = vmatpush1.msra.mxu0 %v451
  %453 = vmatprep.subr.mxu0 0.0
  %v454 = vand.u32 %v66, 4294901760
  %455 = vmatpush1.msra.mxu0 %v454
  %456 = vmatprep.subr.mxu0 0.0
  %v457 = vand.u32 %v67, 4294901760
  %458 = vmatpush1.msra.mxu0 %v457
  %459 = vmatprep.subr.mxu0 0.0
  %v460 = vand.u32 %v68, 4294901760
  %461 = vmatpush1.msra.mxu0 %v460
  %462 = vmatprep.subr.mxu0 0.0
  %v463 = vand.u32 %v69, 4294901760
  %464 = vmatpush1.msra.mxu0 %v463
  %465 = vmatprep.subr.mxu0 0.0
  %v466 = vand.u32 %v70, 4294901760
  %467 = vmatpush1.msra.mxu0 %v466
  %468 = vmatprep.subr.mxu0 0.0
  %v469 = vand.u32 %v71, 4294901760
  %470 = vmatpush1.msra.mxu0 %v469
  %471 = vmatprep.subr.mxu0 0.0
  %v472 = vand.u32 %v72, 4294901760
  %473 = vmatpush1.msra.mxu0 %v472
  %474 = vmatprep.subr.mxu0 0.0
  %475 = vmatpush1.msra.mxu0 0.0
  %476 = vmatprep.subr.mxu0 0.0
  %477 = vmatpush1.msra.mxu0 0.0
  %478 = vmatprep.subr.mxu0 0.0
  %479 = vmatpush1.msra.mxu0 0.0
  %480 = vmatprep.subr.mxu0 0.0
  %481 = vmatpush1.msra.mxu0 0.0
  %482 = vmatprep.subr.mxu0 0.0
  %483 = vmatpush1.msra.mxu0 0.0
  %484 = vmatprep.subr.mxu0 0.0
  %485 = vmatpush1.msra.mxu0 0.0
  %486 = vmatprep.subr.mxu0 0.0
  %487 = vmatpush1.msra.mxu0 0.0
  %488 = vmatprep.subr.mxu0 0.0
  %489 = vmatpush1.msra.mxu0 0.0
  %490 = vmatprep.subr.mxu0 0.0
  %491 = vmatpush1.msra.mxu0 0.0
  %492 = vmatprep.subr.mxu0 0.0
  %493 = vmatpush1.msra.mxu0 0.0
  %494 = vmatprep.subr.mxu0 0.0
  %495 = vmatpush1.msra.mxu0 0.0
  %496 = vmatprep.subr.mxu0 0.0
  %497 = vmatpush1.msra.mxu0 0.0
  %498 = vmatprep.subr.mxu0 0.0
  %499 = vmatpush1.msra.mxu0 0.0
  %500 = vmatprep.subr.mxu0 0.0
  %501 = vmatpush1.msra.mxu0 0.0
  %502 = vmatprep.subr.mxu0 0.0
  %503 = vmatpush1.msra.mxu0 0.0
  %504 = vmatprep.subr.mxu0 0.0
  %505 = vmatpush1.msra.mxu0 0.0
  %506 = vmatprep.mubr.f32.mxu0 0.0
  %v507 = vand.u32 %v56, 4294901760
  %v508 = vsub.f32 %v56, %v507
  %v509 = vand.u32 %v508, 4294901760
  %510 = vmatmul.mubr.f32.gmra.mrb[0].mxu0 %v509
  %v511 = vpop.f32.mrb[0].mxu0
  %v512 = vadd.f32 %v423, %v511
  %v513 = vpop.f32.mrb[0].mxu0
  %514 = vdwg.mxu0
  %515 = vmatprep.subr.mxu0 0.0
  %v516 = vand.u32 %v57, 4294901760
  %v517 = vsub.f32 %v57, %v516
  %v518 = vand.u32 %v517, 4294901760
  %519 = vmatpush1.msra.mxu0 %v518
  %520 = vmatprep.subr.mxu0 0.0
  %v521 = vand.u32 %v58, 4294901760
  %v522 = vsub.f32 %v58, %v521
  %v523 = vand.u32 %v522, 4294901760
  %524 = vmatpush1.msra.mxu0 %v523
  %525 = vmatprep.subr.mxu0 0.0
  %v526 = vand.u32 %v59, 4294901760
  %v527 = vsub.f32 %v59, %v526
  %v528 = vand.u32 %v527, 4294901760
  %529 = vmatpush1.msra.mxu0 %v528
  %530 = vmatprep.subr.mxu0 0.0
  %v531 = vand.u32 %v60, 4294901760
  %v532 = vsub.f32 %v60, %v531
  %v533 = vand.u32 %v532, 4294901760
  %534 = vmatpush1.msra.mxu0 %v533
  %535 = vmatprep.subr.mxu0 0.0
  %v536 = vand.u32 %v61, 4294901760
  %v537 = vsub.f32 %v61, %v536
  %v538 = vand.u32 %v537, 4294901760
  %539 = vmatpush1.msra.mxu0 %v538
  %540 = vmatprep.subr.mxu0 0.0
  %v541 = vand.u32 %v62, 4294901760
  %v542 = vsub.f32 %v62, %v541
  %v543 = vand.u32 %v542, 4294901760
  %544 = vmatpush1.msra.mxu0 %v543
  %545 = vmatprep.subr.mxu0 0.0
  %v546 = vand.u32 %v63, 4294901760
  %v547 = vsub.f32 %v63, %v546
  %v548 = vand.u32 %v547, 4294901760
  %549 = vmatpush1.msra.mxu0 %v548
  %550 = vmatprep.subr.mxu0 0.0
  %v551 = vand.u32 %v64, 4294901760
  %v552 = vsub.f32 %v64, %v551
  %v553 = vand.u32 %v552, 4294901760
  %554 = vmatpush1.msra.mxu0 %v553
  %555 = vmatprep.subr.mxu0 0.0
  %v556 = vand.u32 %v65, 4294901760
  %v557 = vsub.f32 %v65, %v556
  %v558 = vand.u32 %v557, 4294901760
  %559 = vmatpush1.msra.mxu0 %v558
  %560 = vmatprep.subr.mxu0 0.0
  %v561 = vand.u32 %v66, 4294901760
  %v562 = vsub.f32 %v66, %v561
  %v563 = vand.u32 %v562, 4294901760
  %564 = vmatpush1.msra.mxu0 %v563
  %565 = vmatprep.subr.mxu0 0.0
  %v566 = vand.u32 %v67, 4294901760
  %v567 = vsub.f32 %v67, %v566
  %v568 = vand.u32 %v567, 4294901760
  %569 = vmatpush1.msra.mxu0 %v568
  %570 = vmatprep.subr.mxu0 0.0
  %v571 = vand.u32 %v68, 4294901760
  %v572 = vsub.f32 %v68, %v571
  %v573 = vand.u32 %v572, 4294901760
  %574 = vmatpush1.msra.mxu0 %v573
  %575 = vmatprep.subr.mxu0 0.0
  %v576 = vand.u32 %v69, 4294901760
  %v577 = vsub.f32 %v69, %v576
  %v578 = vand.u32 %v577, 4294901760
  %579 = vmatpush1.msra.mxu0 %v578
  %580 = vmatprep.subr.mxu0 0.0
  %v581 = vand.u32 %v70, 4294901760
  %v582 = vsub.f32 %v70, %v581
  %v583 = vand.u32 %v582, 4294901760
  %584 = vmatpush1.msra.mxu0 %v583
  %585 = vmatprep.subr.mxu0 0.0
  %v586 = vand.u32 %v71, 4294901760
  %v587 = vsub.f32 %v71, %v586
  %v588 = vand.u32 %v587, 4294901760
  %589 = vmatpush1.msra.mxu0 %v588
  %590 = vmatprep.subr.mxu0 0.0
  %v591 = vand.u32 %v72, 4294901760
  %v592 = vsub.f32 %v72, %v591
  %v593 = vand.u32 %v592, 4294901760
  %594 = vmatpush1.msra.mxu0 %v593
  %595 = vmatprep.subr.mxu0 0.0
  %596 = vmatpush1.msra.mxu0 0.0
  %597 = vmatprep.subr.mxu0 0.0
  %598 = vmatpush1.msra.mxu0 0.0
  %599 = vmatprep.subr.mxu0 0.0
  %600 = vmatpush1.msra.mxu0 0.0
  %601 = vmatprep.subr.mxu0 0.0
  %602 = vmatpush1.msra.mxu0 0.0
  %603 = vmatprep.subr.mxu0 0.0
  %604 = vmatpush1.msra.mxu0 0.0
  %605 = vmatprep.subr.mxu0 0.0
  %606 = vmatpush1.msra.mxu0 0.0
  %607 = vmatprep.subr.mxu0 0.0
  %608 = vmatpush1.msra.mxu0 0.0
  %609 = vmatprep.subr.mxu0 0.0
  %610 = vmatpush1.msra.mxu0 0.0
  %611 = vmatprep.subr.mxu0 0.0
  %612 = vmatpush1.msra.mxu0 0.0
  %613 = vmatprep.subr.mxu0 0.0
  %614 = vmatpush1.msra.mxu0 0.0
  %615 = vmatprep.subr.mxu0 0.0
  %616 = vmatpush1.msra.mxu0 0.0
  %617 = vmatprep.subr.mxu0 0.0
  %618 = vmatpush1.msra.mxu0 0.0
  %619 = vmatprep.subr.mxu0 0.0
  %620 = vmatpush1.msra.mxu0 0.0
  %621 = vmatprep.subr.mxu0 0.0
  %622 = vmatpush1.msra.mxu0 0.0
  %623 = vmatprep.subr.mxu0 0.0
  %624 = vmatpush1.msra.mxu0 0.0
  %625 = vmatprep.subr.mxu0 0.0
  %626 = vmatpush1.msra.mxu0 0.0
  %627 = vmatprep.mubr.f32.mxu0 0.0
  %v628 = vand.u32 %v56, 4294901760
  %629 = vmatmul.mubr.f32.gmra.mrb[0].mxu0 %v628
  %v630 = vpop.f32.mrb[0].mxu0
  %v631 = vadd.f32 %v512, %v630
  %v632 = vpop.f32.mrb[0].mxu0
  %633 = vdwg.mxu0
  %634 = vmatprep.subr.mxu0 0.0
  %v635 = vand.u32 %v57, 4294901760
  %636 = vmatpush1.msra.mxu0 %v635
  %637 = vmatprep.subr.mxu0 0.0
  %v638 = vand.u32 %v58, 4294901760
  %639 = vmatpush1.msra.mxu0 %v638
  %640 = vmatprep.subr.mxu0 0.0
  %v641 = vand.u32 %v59, 4294901760
  %642 = vmatpush1.msra.mxu0 %v641
  %643 = vmatprep.subr.mxu0 0.0
  %v644 = vand.u32 %v60, 4294901760
  %645 = vmatpush1.msra.mxu0 %v644
  %646 = vmatprep.subr.mxu0 0.0
  %v647 = vand.u32 %v61, 4294901760
  %648 = vmatpush1.msra.mxu0 %v647
  %649 = vmatprep.subr.mxu0 0.0
  %v650 = vand.u32 %v62, 4294901760
  %651 = vmatpush1.msra.mxu0 %v650
  %652 = vmatprep.subr.mxu0 0.0
  %v653 = vand.u32 %v63, 4294901760
  %654 = vmatpush1.msra.mxu0 %v653
  %655 = vmatprep.subr.mxu0 0.0
  %v656 = vand.u32 %v64, 4294901760
  %657 = vmatpush1.msra.mxu0 %v656
  %658 = vmatprep.subr.mxu0 0.0
  %v659 = vand.u32 %v65, 4294901760
  %660 = vmatpush1.msra.mxu0 %v659
  %661 = vmatprep.subr.mxu0 0.0
  %v662 = vand.u32 %v66, 4294901760
  %663 = vmatpush1.msra.mxu0 %v662
  %664 = vmatprep.subr.mxu0 0.0
  %v665 = vand.u32 %v67, 4294901760
  %666 = vmatpush1.msra.mxu0 %v665
  %667 = vmatprep.subr.mxu0 0.0
  %v668 = vand.u32 %v68, 4294901760
  %669 = vmatpush1.msra.mxu0 %v668
  %670 = vmatprep.subr.mxu0 0.0
  %v671 = vand.u32 %v69, 4294901760
  %672 = vmatpush1.msra.mxu0 %v671
  %673 = vmatprep.subr.mxu0 0.0
  %v674 = vand.u32 %v70, 4294901760
  %675 = vmatpush1.msra.mxu0 %v674
  %676 = vmatprep.subr.mxu0 0.0
  %v677 = vand.u32 %v71, 4294901760
  %678 = vmatpush1.msra.mxu0 %v677
  %679 = vmatprep.subr.mxu0 0.0
  %v680 = vand.u32 %v72, 4294901760
  %681 = vmatpush1.msra.mxu0 %v680
  %682 = vmatprep.subr.mxu0 0.0
  %683 = vmatpush1.msra.mxu0 0.0
  %684 = vmatprep.subr.mxu0 0.0
  %685 = vmatpush1.msra.mxu0 0.0
  %686 = vmatprep.subr.mxu0 0.0
  %687 = vmatpush1.msra.mxu0 0.0
  %688 = vmatprep.subr.mxu0 0.0
  %689 = vmatpush1.msra.mxu0 0.0
  %690 = vmatprep.subr.mxu0 0.0
  %691 = vmatpush1.msra.mxu0 0.0
  %692 = vmatprep.subr.mxu0 0.0
  %693 = vmatpush1.msra.mxu0 0.0
  %694 = vmatprep.subr.mxu0 0.0
  %695 = vmatpush1.msra.mxu0 0.0
  %696 = vmatprep.subr.mxu0 0.0
  %697 = vmatpush1.msra.mxu0 0.0
  %698 = vmatprep.subr.mxu0 0.0
  %699 = vmatpush1.msra.mxu0 0.0
  %700 = vmatprep.subr.mxu0 0.0
  %701 = vmatpush1.msra.mxu0 0.0
  %702 = vmatprep.subr.mxu0 0.0
  %703 = vmatpush1.msra.mxu0 0.0
  %704 = vmatprep.subr.mxu0 0.0
  %705 = vmatpush1.msra.mxu0 0.0
  %706 = vmatprep.subr.mxu0 0.0
  %707 = vmatpush1.msra.mxu0 0.0
  %708 = vmatprep.subr.mxu0 0.0
  %709 = vmatpush1.msra.mxu0 0.0
  %710 = vmatprep.subr.mxu0 0.0
  %711 = vmatpush1.msra.mxu0 0.0
  %712 = vmatprep.subr.mxu0 0.0
  %713 = vmatpush1.msra.mxu0 0.0
  %714 = vmatprep.mubr.f32.mxu0 0.0
  %v715 = vand.u32 %v56, 4294901760
  %716 = vmatmul.mubr.f32.gmra.mrb[0].mxu0 %v715
  %v717 = vpop.f32.mrb[0].mxu0
  %v718 = vadd.f32 %v631, %v717
  %v719 = vpop.f32.mrb[0].mxu0
  %720 = vdwg.mxu0
  %v721 = vmax.f32 %v718, 0.0
  %v722 = vld [vmem:[%s5] sm:$0xff]
  %v723 = vld [vmem:[%s5 + $0x8] sm:$0xff]
  %v724 = vld [vmem:[%s5 + $0x10] sm:$0xff]
  %v725 = vld [vmem:[%s5 + $0x18] sm:$0xff]
  %v726 = vld [vmem:[%s5 + $0x20] sm:$0xff]
  %v727 = vld [vmem:[%s5 + $0x28] sm:$0xff]
  %v728 = vld [vmem:[%s5 + $0x30] sm:$0xff]
  %v729 = vld [vmem:[%s5 + $0x38] sm:$0xff]
  %v730 = vld [vmem:[%s5 + $0x40] sm:$0xff]
  %v731 = vld [vmem:[%s5 + $0x48] sm:$0xff]
  %v732 = vld [vmem:[%s5 + $0x50] sm:$0xff]
  %v733 = vld [vmem:[%s5 + $0x58] sm:$0xff]
  %v734 = vld [vmem:[%s5 + $0x60] sm:$0xff]
  %v735 = vld [vmem:[%s5 + $0x68] sm:$0xff]
  %v736 = vld [vmem:[%s5 + $0x70] sm:$0xff]
  %v737 = vld [vmem:[%s5 + $0x78] sm:$0xff]
  %v738 = vld [vmem:[%s6] sm:$0x1]
  %v740 = vlaneseq
  %v741 = vshrl.u32 %v740, 7
  %v742 = vsub.s32 0, %v741
  %v743 = vrot.slane %v738, %v742
  %745 = vmatprep.subr.mxu0 0.0
  %v746 = vand.u32 %v722, 4294901760
  %747 = vmatpush1.msra.mxu0 %v746
  %748 = vmatprep.subr.mxu0 0.0
  %v749 = vand.u32 %v723, 4294901760
  %750 = vmatpush1.msra.mxu0 %v749
  %751 = vmatprep.subr.mxu0 0.0
  %v752 = vand.u32 %v724, 4294901760
  %753 = vmatpush1.msra.mxu0 %v752
  %754 = vmatprep.subr.mxu0 0.0
  %v755 = vand.u32 %v725, 4294901760
  %756 = vmatpush1.msra.mxu0 %v755
  %757 = vmatprep.subr.mxu0 0.0
  %v758 = vand.u32 %v726, 4294901760
  %759 = vmatpush1.msra.mxu0 %v758
  %760 = vmatprep.subr.mxu0 0.0
  %v761 = vand.u32 %v727, 4294901760
  %762 = vmatpush1.msra.mxu0 %v761
  %763 = vmatprep.subr.mxu0 0.0
  %v764 = vand.u32 %v728, 4294901760
  %765 = vmatpush1.msra.mxu0 %v764
  %766 = vmatprep.subr.mxu0 0.0
  %v767 = vand.u32 %v729, 4294901760
  %768 = vmatpush1.msra.mxu0 %v767
  %769 = vmatprep.subr.mxu0 0.0
  %v770 = vand.u32 %v730, 4294901760
  %771 = vmatpush1.msra.mxu0 %v770
  %772 = vmatprep.subr.mxu0 0.0
  %v773 = vand.u32 %v731, 4294901760
  %774 = vmatpush1.msra.mxu0 %v773
  %775 = vmatprep.subr.mxu0 0.0
  %v776 = vand.u32 %v732, 4294901760
  %777 = vmatpush1.msra.mxu0 %v776
  %778 = vmatprep.subr.mxu0 0.0
  %v779 = vand.u32 %v733, 4294901760
  %780 = vmatpush1.msra.mxu0 %v779
  %781 = vmatprep.subr.mxu0 0.0
  %v782 = vand.u32 %v734, 4294901760
  %783 = vmatpush1.msra.mxu0 %v782
  %784 = vmatprep.subr.mxu0 0.0
  %v785 = vand.u32 %v735, 4294901760
  %786 = vmatpush1.msra.mxu0 %v785
  %787 = vmatprep.subr.mxu0 0.0
  %v788 = vand.u32 %v736, 4294901760
  %789 = vmatpush1.msra.mxu0 %v788
  %790 = vmatprep.subr.mxu0 0.0
  %v791 = vand.u32 %v737, 4294901760
  %792 = vmatpush1.msra.mxu0 %v791
  %793 = vmatprep.subr.mxu0 0.0
  %794 = vmatpush1.msra.mxu0 0.0
  %795 = vmatprep.subr.mxu0 0.0
  %796 = vmatpush1.msra.mxu0 0.0
  %797 = vmatprep.subr.mxu0 0.0
  %798 = vmatpush1.msra.mxu0 0.0
  %799 = vmatprep.subr.mxu0 0.0
  %800 = vmatpush1.msra.mxu0 0.0
  %801 = vmatprep.subr.mxu0 0.0
  %802 = vmatpush1.msra.mxu0 0.0
  %803 = vmatprep.subr.mxu0 0.0
  %804 = vmatpush1.msra.mxu0 0.0
  %805 = vmatprep.subr.mxu0 0.0
  %806 = vmatpush1.msra.mxu0 0.0
  %807 = vmatprep.subr.mxu0 0.0
  %808 = vmatpush1.msra.mxu0 0.0
  %809 = vmatprep.subr.mxu0 0.0
  %810 = vmatpush1.msra.mxu0 0.0
  %811 = vmatprep.subr.mxu0 0.0
  %812 = vmatpush1.msra.mxu0 0.0
  %813 = vmatprep.subr.mxu0 0.0
  %814 = vmatpush1.msra.mxu0 0.0
  %815 = vmatprep.subr.mxu0 0.0
  %816 = vmatpush1.msra.mxu0 0.0
  %817 = vmatprep.subr.mxu0 0.0
  %818 = vmatpush1.msra.mxu0 0.0
  %819 = vmatprep.subr.mxu0 0.0
  %820 = vmatpush1.msra.mxu0 0.0
  %821 = vmatprep.subr.mxu0 0.0
  %822 = vmatpush1.msra.mxu0 0.0
  %823 = vmatprep.subr.mxu0 0.0
  %824 = vmatpush1.msra.mxu0 0.0
  %825 = vmatprep.mubr.f32.mxu0 0.0
  %v826 = vand.u32 %v721, 4294901760
  %v827 = vsub.f32 %v721, %v826
  %v828 = vand.u32 %v827, 4294901760
  %v829 = vsub.f32 %v827, %v828
  %v830 = vand.u32 %v829, 4294901760
  %831 = vmatmul.mubr.f32.gmra.mrb[0].mxu0 %v830
  %v832 = vpop.f32.mrb[0].mxu0
  %v833 = vadd.f32 %v743, %v832
  %v834 = vpop.f32.mrb[0].mxu0
  %835 = vdwg.mxu0
  %836 = vmatprep.subr.mxu0 0.0
  %v837 = vand.u32 %v722, 4294901760
  %v838 = vsub.f32 %v722, %v837
  %v839 = vand.u32 %v838, 4294901760
  %v840 = vsub.f32 %v838, %v839
  %v841 = vand.u32 %v840, 4294901760
  %842 = vmatpush1.msra.mxu0 %v841
  %843 = vmatprep.subr.mxu0 0.0
  %v844 = vand.u32 %v723, 4294901760
  %v845 = vsub.f32 %v723, %v844
  %v846 = vand.u32 %v845, 4294901760
  %v847 = vsub.f32 %v845, %v846
  %v848 = vand.u32 %v847, 4294901760
  %849 = vmatpush1.msra.mxu0 %v848
  %850 = vmatprep.subr.mxu0 0.0
  %v851 = vand.u32 %v724, 4294901760
  %v852 = vsub.f32 %v724, %v851
  %v853 = vand.u32 %v852, 4294901760
  %v854 = vsub.f32 %v852, %v853
  %v855 = vand.u32 %v854, 4294901760
  %856 = vmatpush1.msra.mxu0 %v855
  %857 = vmatprep.subr.mxu0 0.0
  %v858 = vand.u32 %v725, 4294901760
  %v859 = vsub.f32 %v725, %v858
  %v860 = vand.u32 %v859, 4294901760
  %v861 = vsub.f32 %v859, %v860
  %v862 = vand.u32 %v861, 4294901760
  %863 = vmatpush1.msra.mxu0 %v862
  %864 = vmatprep.subr.mxu0 0.0
  %v865 = vand.u32 %v726, 4294901760
  %v866 = vsub.f32 %v726, %v865
  %v867 = vand.u32 %v866, 4294901760
  %v868 = vsub.f32 %v866, %v867
  %v869 = vand.u32 %v868, 4294901760
  %870 = vmatpush1.msra.mxu0 %v869
  %871 = vmatprep.subr.mxu0 0.0
  %v872 = vand.u32 %v727, 4294901760
  %v873 = vsub.f32 %v727, %v872
  %v874 = vand.u32 %v873, 4294901760
  %v875 = vsub.f32 %v873, %v874
  %v876 = vand.u32 %v875, 4294901760
  %877 = vmatpush1.msra.mxu0 %v876
  %878 = vmatprep.subr.mxu0 0.0
  %v879 = vand.u32 %v728, 4294901760
  %v880 = vsub.f32 %v728, %v879
  %v881 = vand.u32 %v880, 4294901760
  %v882 = vsub.f32 %v880, %v881
  %v883 = vand.u32 %v882, 4294901760
  %884 = vmatpush1.msra.mxu0 %v883
  %885 = vmatprep.subr.mxu0 0.0
  %v886 = vand.u32 %v729, 4294901760
  %v887 = vsub.f32 %v729, %v886
  %v888 = vand.u32 %v887, 4294901760
  %v889 = vsub.f32 %v887, %v888
  %v890 = vand.u32 %v889, 4294901760
  %891 = vmatpush1.msra.mxu0 %v890
  %892 = vmatprep.subr.mxu0 0.0
  %v893 = vand.u32 %v730, 4294901760
  %v894 = vsub.f32 %v730, %v893
  %v895 = vand.u32 %v894, 4294901760
  %v896 = vsub.f32 %v894, %v895
  %v897 = vand.u32 %v896, 4294901760
  %898 = vmatpush1.msra.mxu0 %v897
  %899 = vmatprep.subr.mxu0 0.0
  %v900 = vand.u32 %v731, 4294901760
  %v901 = vsub.f32 %v731, %v900
  %v902 = vand.u32 %v901, 4294901760
  %v903 = vsub.f32 %v901, %v902
  %v904 = vand.u32 %v903, 4294901760
  %905 = vmatpush1.msra.mxu0 %v904
  %906 = vmatprep.subr.mxu0 0.0
  %v907 = vand.u32 %v732, 4294901760
  %v908 = vsub.f32 %v732, %v907
  %v909 = vand.u32 %v908, 4294901760
  %v910 = vsub.f32 %v908, %v909
  %v911 = vand.u32 %v910, 4294901760
  %912 = vmatpush1.msra.mxu0 %v911
  %913 = vmatprep.subr.mxu0 0.0
  %v914 = vand.u32 %v733, 4294901760
  %v915 = vsub.f32 %v733, %v914
  %v916 = vand.u32 %v915, 4294901760
  %v917 = vsub.f32 %v915, %v916
  %v918 = vand.u32 %v917, 4294901760
  %919 = vmatpush1.msra.mxu0 %v918
  %920 = vmatprep.subr.mxu0 0.0
  %v921 = vand.u32 %v734, 4294901760
  %v922 = vsub.f32 %v734, %v921
  %v923 = vand.u32 %v922, 4294901760
  %v924 = vsub.f32 %v922, %v923
  %v925 = vand.u32 %v924, 4294901760
  %926 = vmatpush1.msra.mxu0 %v925
  %927 = vmatprep.subr.mxu0 0.0
  %v928 = vand.u32 %v735, 4294901760
  %v929 = vsub.f32 %v735, %v928
  %v930 = vand.u32 %v929, 4294901760
  %v931 = vsub.f32 %v929, %v930
  %v932 = vand.u32 %v931, 4294901760
  %933 = vmatpush1.msra.mxu0 %v932
  %934 = vmatprep.subr.mxu0 0.0
  %v935 = vand.u32 %v736, 4294901760
  %v936 = vsub.f32 %v736, %v935
  %v937 = vand.u32 %v936, 4294901760
  %v938 = vsub.f32 %v936, %v937
  %v939 = vand.u32 %v938, 4294901760
  %940 = vmatpush1.msra.mxu0 %v939
  %941 = vmatprep.subr.mxu0 0.0
  %v942 = vand.u32 %v737, 4294901760
  %v943 = vsub.f32 %v737, %v942
  %v944 = vand.u32 %v943, 4294901760
  %v945 = vsub.f32 %v943, %v944
  %v946 = vand.u32 %v945, 4294901760
  %947 = vmatpush1.msra.mxu0 %v946
  %948 = vmatprep.subr.mxu0 0.0
  %949 = vmatpush1.msra.mxu0 0.0
  %950 = vmatprep.subr.mxu0 0.0
  %951 = vmatpush1.msra.mxu0 0.0
  %952 = vmatprep.subr.mxu0 0.0
  %953 = vmatpush1.msra.mxu0 0.0
  %954 = vmatprep.subr.mxu0 0.0
  %955 = vmatpush1.msra.mxu0 0.0
  %956 = vmatprep.subr.mxu0 0.0
  %957 = vmatpush1.msra.mxu0 0.0
  %958 = vmatprep.subr.mxu0 0.0
  %959 = vmatpush1.msra.mxu0 0.0
  %960 = vmatprep.subr.mxu0 0.0
  %961 = vmatpush1.msra.mxu0 0.0
  %962 = vmatprep.subr.mxu0 0.0
  %963 = vmatpush1.msra.mxu0 0.0
  %964 = vmatprep.subr.mxu0 0.0
  %965 = vmatpush1.msra.mxu0 0.0
  %966 = vmatprep.subr.mxu0 0.0
  %967 = vmatpush1.msra.mxu0 0.0
  %968 = vmatprep.subr.mxu0 0.0
  %969 = vmatpush1.msra.mxu0 0.0
  %970 = vmatprep.subr.mxu0 0.0
  %971 = vmatpush1.msra.mxu0 0.0
  %972 = vmatprep.subr.mxu0 0.0
  %973 = vmatpush1.msra.mxu0 0.0
  %974 = vmatprep.subr.mxu0 0.0
  %975 = vmatpush1.msra.mxu0 0.0
  %976 = vmatprep.subr.mxu0 0.0
  %977 = vmatpush1.msra.mxu0 0.0
  %978 = vmatprep.subr.mxu0 0.0
  %979 = vmatpush1.msra.mxu0 0.0
  %980 = vmatprep.mubr.f32.mxu0 0.0
  %v981 = vand.u32 %v721, 4294901760
  %982 = vmatmul.mubr.f32.gmra.mrb[0].mxu0 %v981
  %v983 = vpop.f32.mrb[0].mxu0
  %v984 = vadd.f32 %v833, %v983
  %v985 = vpop.f32.mrb[0].mxu0
  %986 = vdwg.mxu0
  %987 = vmatprep.subr.mxu0 0.0
  %v988 = vand.u32 %v722, 4294901760
  %v989 = vsub.f32 %v722, %v988
  %990 = vmatpush1.msra.mxu0 %v989
  %991 = vmatprep.subr.mxu0 0.0
  %v992 = vand.u32 %v723, 4294901760
  %v993 = vsub.f32 %v723, %v992
  %994 = vmatpush1.msra.mxu0 %v993
  %995 = vmatprep.subr.mxu0 0.0
  %v996 = vand.u32 %v724, 4294901760
  %v997 = vsub.f32 %v724, %v996
  %998 = vmatpush1.msra.mxu0 %v997
  %999 = vmatprep.subr.mxu0 0.0
  %v1000 = vand.u32 %v725, 4294901760
  %v1001 = vsub.f32 %v725, %v1000
  %1002 = vmatpush1.msra.mxu0 %v1001
  %1003 = vmatprep.subr.mxu0 0.0
  %v1004 = vand.u32 %v726, 4294901760
  %v1005 = vsub.f32 %v726, %v1004
  %1006 = vmatpush1.msra.mxu0 %v1005
  %1007 = vmatprep.subr.mxu0 0.0
  %v1008 = vand.u32 %v727, 4294901760
  %v1009 = vsub.f32 %v727, %v1008
  %1010 = vmatpush1.msra.mxu0 %v1009
  %1011 = vmatprep.subr.mxu0 0.0
  %v1012 = vand.u32 %v728, 4294901760
  %v1013 = vsub.f32 %v728, %v1012
  %1014 = vmatpush1.msra.mxu0 %v1013
  %1015 = vmatprep.subr.mxu0 0.0
  %v1016 = vand.u32 %v729, 4294901760
  %v1017 = vsub.f32 %v729, %v1016
  %1018 = vmatpush1.msra.mxu0 %v1017
  %1019 = vmatprep.subr.mxu0 0.0
  %v1020 = vand.u32 %v730, 4294901760
  %v1021 = vsub.f32 %v730, %v1020
  %1022 = vmatpush1.msra.mxu0 %v1021
  %1023 = vmatprep.subr.mxu0 0.0
  %v1024 = vand.u32 %v731, 4294901760
  %v1025 = vsub.f32 %v731, %v1024
  %1026 = vmatpush1.msra.mxu0 %v1025
  %1027 = vmatprep.subr.mxu0 0.0
  %v1028 = vand.u32 %v732, 4294901760
  %v1029 = vsub.f32 %v732, %v1028
  %1030 = vmatpush1.msra.mxu0 %v1029
  %1031 = vmatprep.subr.mxu0 0.0
  %v1032 = vand.u32 %v733, 4294901760
  %v1033 = vsub.f32 %v733, %v1032
  %1034 = vmatpush1.msra.mxu0 %v1033
  %1035 = vmatprep.subr.mxu0 0.0
  %v1036 = vand.u32 %v734, 4294901760
  %v1037 = vsub.f32 %v734, %v1036
  %1038 = vmatpush1.msra.mxu0 %v1037
  %1039 = vmatprep.subr.mxu0 0.0
  %v1040 = vand.u32 %v735, 4294901760
  %v1041 = vsub.f32 %v735, %v1040
  %1042 = vmatpush1.msra.mxu0 %v1041
  %1043 = vmatprep.subr.mxu0 0.0
  %v1044 = vand.u32 %v736, 4294901760
  %v1045 = vsub.f32 %v736, %v1044
  %1046 = vmatpush1.msra.mxu0 %v1045
  %1047 = vmatprep.subr.mxu0 0.0
  %v1048 = vand.u32 %v737, 4294901760
  %v1049 = vsub.f32 %v737, %v1048
  %1050 = vmatpush1.msra.mxu0 %v1049
  %1051 = vmatprep.subr.mxu0 0.0
  %1052 = vmatpush1.msra.mxu0 0.0
  %1053 = vmatprep.subr.mxu0 0.0
  %1054 = vmatpush1.msra.mxu0 0.0
  %1055 = vmatprep.subr.mxu0 0.0
  %1056 = vmatpush1.msra.mxu0 0.0
  %1057 = vmatprep.subr.mxu0 0.0
  %1058 = vmatpush1.msra.mxu0 0.0
  %1059 = vmatprep.subr.mxu0 0.0
  %1060 = vmatpush1.msra.mxu0 0.0
  %1061 = vmatprep.subr.mxu0 0.0
  %1062 = vmatpush1.msra.mxu0 0.0
  %1063 = vmatprep.subr.mxu0 0.0
  %1064 = vmatpush1.msra.mxu0 0.0
  %1065 = vmatprep.subr.mxu0 0.0
  %1066 = vmatpush1.msra.mxu0 0.0
  %1067 = vmatprep.subr.mxu0 0.0
  %1068 = vmatpush1.msra.mxu0 0.0
  %1069 = vmatprep.subr.mxu0 0.0
  %1070 = vmatpush1.msra.mxu0 0.0
  %1071 = vmatprep.subr.mxu0 0.0
  %1072 = vmatpush1.msra.mxu0 0.0
  %1073 = vmatprep.subr.mxu0 0.0
  %1074 = vmatpush1.msra.mxu0 0.0
  %1075 = vmatprep.subr.mxu0 0.0
  %1076 = vmatpush1.msra.mxu0 0.0
  %1077 = vmatprep.subr.mxu0 0.0
  %1078 = vmatpush1.msra.mxu0 0.0
  %1079 = vmatprep.subr.mxu0 0.0
  %1080 = vmatpush1.msra.mxu0 0.0
  %1081 = vmatprep.subr.mxu0 0.0
  %1082 = vmatpush1.msra.mxu0 0.0
  %1083 = vmatprep.mubr.f32.mxu0 0.0
  %v1084 = vand.u32 %v721, 4294901760
  %v1085 = vsub.f32 %v721, %v1084
  %1086 = vmatmul.mubr.f32.gmra.mrb[0].mxu0 %v1085
  %v1087 = vpop.f32.mrb[0].mxu0
  %v1088 = vadd.f32 %v984, %v1087
  %v1089 = vpop.f32.mrb[0].mxu0
  %1090 = vdwg.mxu0
  %1091 = vmatprep.subr.mxu0 0.0
  %v1092 = vand.u32 %v722, 4294901760
  %1093 = vmatpush1.msra.mxu0 %v1092
  %1094 = vmatprep.subr.mxu0 0.0
  %v1095 = vand.u32 %v723, 4294901760
  %1096 = vmatpush1.msra.mxu0 %v1095
  %1097 = vmatprep.subr.mxu0 0.0
  %v1098 = vand.u32 %v724, 4294901760
  %1099 = vmatpush1.msra.mxu0 %v1098
  %1100 = vmatprep.subr.mxu0 0.0
  %v1101 = vand.u32 %v725, 4294901760
  %1102 = vmatpush1.msra.mxu0 %v1101
  %1103 = vmatprep.subr.mxu0 0.0
  %v1104 = vand.u32 %v726, 4294901760
  %1105 = vmatpush1.msra.mxu0 %v1104
  %1106 = vmatprep.subr.mxu0 0.0
  %v1107 = vand.u32 %v727, 4294901760
  %1108 = vmatpush1.msra.mxu0 %v1107
  %1109 = vmatprep.subr.mxu0 0.0
  %v1110 = vand.u32 %v728, 4294901760
  %1111 = vmatpush1.msra.mxu0 %v1110
  %1112 = vmatprep.subr.mxu0 0.0
  %v1113 = vand.u32 %v729, 4294901760
  %1114 = vmatpush1.msra.mxu0 %v1113
  %1115 = vmatprep.subr.mxu0 0.0
  %v1116 = vand.u32 %v730, 4294901760
  %1117 = vmatpush1.msra.mxu0 %v1116
  %1118 = vmatprep.subr.mxu0 0.0
  %v1119 = vand.u32 %v731, 4294901760
  %1120 = vmatpush1.msra.mxu0 %v1119
  %1121 = vmatprep.subr.mxu0 0.0
  %v1122 = vand.u32 %v732, 4294901760
  %1123 = vmatpush1.msra.mxu0 %v1122
  %1124 = vmatprep.subr.mxu0 0.0
  %v1125 = vand.u32 %v733, 4294901760
  %1126 = vmatpush1.msra.mxu0 %v1125
  %1127 = vmatprep.subr.mxu0 0.0
  %v1128 = vand.u32 %v734, 4294901760
  %1129 = vmatpush1.msra.mxu0 %v1128
  %1130 = vmatprep.subr.mxu0 0.0
  %v1131 = vand.u32 %v735, 4294901760
  %1132 = vmatpush1.msra.mxu0 %v1131
  %1133 = vmatprep.subr.mxu0 0.0
  %v1134 = vand.u32 %v736, 4294901760
  %1135 = vmatpush1.msra.mxu0 %v1134
  %1136 = vmatprep.subr.mxu0 0.0
  %v1137 = vand.u32 %v737, 4294901760
  %1138 = vmatpush1.msra.mxu0 %v1137
  %1139 = vmatprep.subr.mxu0 0.0
  %1140 = vmatpush1.msra.mxu0 0.0
  %1141 = vmatprep.subr.mxu0 0.0
  %1142 = vmatpush1.msra.mxu0 0.0
  %1143 = vmatprep.subr.mxu0 0.0
  %1144 = vmatpush1.msra.mxu0 0.0
  %1145 = vmatprep.subr.mxu0 0.0
  %1146 = vmatpush1.msra.mxu0 0.0
  %1147 = vmatprep.subr.mxu0 0.0
  %1148 = vmatpush1.msra.mxu0 0.0
  %1149 = vmatprep.subr.mxu0 0.0
  %1150 = vmatpush1.msra.mxu0 0.0
  %1151 = vmatprep.subr.mxu0 0.0
  %1152 = vmatpush1.msra.mxu0 0.0
  %1153 = vmatprep.subr.mxu0 0.0
  %1154 = vmatpush1.msra.mxu0 0.0
  %1155 = vmatprep.subr.mxu0 0.0
  %1156 = vmatpush1.msra.mxu0 0.0
  %1157 = vmatprep.subr.mxu0 0.0
  %1158 = vmatpush1.msra.mxu0 0.0
  %1159 = vmatprep.subr.mxu0 0.0
  %1160 = vmatpush1.msra.mxu0 0.0
  %1161 = vmatprep.subr.mxu0 0.0
  %1162 = vmatpush1.msra.mxu0 0.0
  %1163 = vmatprep.subr.mxu0 0.0
  %1164 = vmatpush1.msra.mxu0 0.0
  %1165 = vmatprep.subr.mxu0 0.0
  %1166 = vmatpush1.msra.mxu0 0.0
  %1167 = vmatprep.subr.mxu0 0.0
  %1168 = vmatpush1.msra.mxu0 0.0
  %1169 = vmatprep.subr.mxu0 0.0
  %1170 = vmatpush1.msra.mxu0 0.0
  %1171 = vmatprep.mubr.f32.mxu0 0.0
  %v1172 = vand.u32 %v721, 4294901760
  %v1173 = vsub.f32 %v721, %v1172
  %v1174 = vand.u32 %v1173, 4294901760
  %1175 = vmatmul.mubr.f32.gmra.mrb[0].mxu0 %v1174
  %v1176 = vpop.f32.mrb[0].mxu0
  %v1177 = vadd.f32 %v1088, %v1176
  %v1178 = vpop.f32.mrb[0].mxu0
  %1179 = vdwg.mxu0
  %1180 = vmatprep.subr.mxu0 0.0
  %v1181 = vand.u32 %v722, 4294901760
  %v1182 = vsub.f32 %v722, %v1181
  %v1183 = vand.u32 %v1182, 4294901760
  %1184 = vmatpush1.msra.mxu0 %v1183
  %1185 = vmatprep.subr.mxu0 0.0
  %v1186 = vand.u32 %v723, 4294901760
  %v1187 = vsub.f32 %v723, %v1186
  %v1188 = vand.u32 %v1187, 4294901760
  %1189 = vmatpush1.msra.mxu0 %v1188
  %1190 = vmatprep.subr.mxu0 0.0
  %v1191 = vand.u32 %v724, 4294901760
  %v1192 = vsub.f32 %v724, %v1191
  %v1193 = vand.u32 %v1192, 4294901760
  %1194 = vmatpush1.msra.mxu0 %v1193
  %1195 = vmatprep.subr.mxu0 0.0
  %v1196 = vand.u32 %v725, 4294901760
  %v1197 = vsub.f32 %v725, %v1196
  %v1198 = vand.u32 %v1197, 4294901760
  %1199 = vmatpush1.msra.mxu0 %v1198
  %1200 = vmatprep.subr.mxu0 0.0
  %v1201 = vand.u32 %v726, 4294901760
  %v1202 = vsub.f32 %v726, %v1201
  %v1203 = vand.u32 %v1202, 4294901760
  %1204 = vmatpush1.msra.mxu0 %v1203
  %1205 = vmatprep.subr.mxu0 0.0
  %v1206 = vand.u32 %v727, 4294901760
  %v1207 = vsub.f32 %v727, %v1206
  %v1208 = vand.u32 %v1207, 4294901760
  %1209 = vmatpush1.msra.mxu0 %v1208
  %1210 = vmatprep.subr.mxu0 0.0
  %v1211 = vand.u32 %v728, 4294901760
  %v1212 = vsub.f32 %v728, %v1211
  %v1213 = vand.u32 %v1212, 4294901760
  %1214 = vmatpush1.msra.mxu0 %v1213
  %1215 = vmatprep.subr.mxu0 0.0
  %v1216 = vand.u32 %v729, 4294901760
  %v1217 = vsub.f32 %v729, %v1216
  %v1218 = vand.u32 %v1217, 4294901760
  %1219 = vmatpush1.msra.mxu0 %v1218
  %1220 = vmatprep.subr.mxu0 0.0
  %v1221 = vand.u32 %v730, 4294901760
  %v1222 = vsub.f32 %v730, %v1221
  %v1223 = vand.u32 %v1222, 4294901760
  %1224 = vmatpush1.msra.mxu0 %v1223
  %1225 = vmatprep.subr.mxu0 0.0
  %v1226 = vand.u32 %v731, 4294901760
  %v1227 = vsub.f32 %v731, %v1226
  %v1228 = vand.u32 %v1227, 4294901760
  %1229 = vmatpush1.msra.mxu0 %v1228
  %1230 = vmatprep.subr.mxu0 0.0
  %v1231 = vand.u32 %v732, 4294901760
  %v1232 = vsub.f32 %v732, %v1231
  %v1233 = vand.u32 %v1232, 4294901760
  %1234 = vmatpush1.msra.mxu0 %v1233
  %1235 = vmatprep.subr.mxu0 0.0
  %v1236 = vand.u32 %v733, 4294901760
  %v1237 = vsub.f32 %v733, %v1236
  %v1238 = vand.u32 %v1237, 4294901760
  %1239 = vmatpush1.msra.mxu0 %v1238
  %1240 = vmatprep.subr.mxu0 0.0
  %v1241 = vand.u32 %v734, 4294901760
  %v1242 = vsub.f32 %v734, %v1241
  %v1243 = vand.u32 %v1242, 4294901760
  %1244 = vmatpush1.msra.mxu0 %v1243
  %1245 = vmatprep.subr.mxu0 0.0
  %v1246 = vand.u32 %v735, 4294901760
  %v1247 = vsub.f32 %v735, %v1246
  %v1248 = vand.u32 %v1247, 4294901760
  %1249 = vmatpush1.msra.mxu0 %v1248
  %1250 = vmatprep.subr.mxu0 0.0
  %v1251 = vand.u32 %v736, 4294901760
  %v1252 = vsub.f32 %v736, %v1251
  %v1253 = vand.u32 %v1252, 4294901760
  %1254 = vmatpush1.msra.mxu0 %v1253
  %1255 = vmatprep.subr.mxu0 0.0
  %v1256 = vand.u32 %v737, 4294901760
  %v1257 = vsub.f32 %v737, %v1256
  %v1258 = vand.u32 %v1257, 4294901760
  %1259 = vmatpush1.msra.mxu0 %v1258
  %1260 = vmatprep.subr.mxu0 0.0
  %1261 = vmatpush1.msra.mxu0 0.0
  %1262 = vmatprep.subr.mxu0 0.0
  %1263 = vmatpush1.msra.mxu0 0.0
  %1264 = vmatprep.subr.mxu0 0.0
  %1265 = vmatpush1.msra.mxu0 0.0
  %1266 = vmatprep.subr.mxu0 0.0
  %1267 = vmatpush1.msra.mxu0 0.0
  %1268 = vmatprep.subr.mxu0 0.0
  %1269 = vmatpush1.msra.mxu0 0.0
  %1270 = vmatprep.subr.mxu0 0.0
  %1271 = vmatpush1.msra.mxu0 0.0
  %1272 = vmatprep.subr.mxu0 0.0
  %1273 = vmatpush1.msra.mxu0 0.0
  %1274 = vmatprep.subr.mxu0 0.0
  %1275 = vmatpush1.msra.mxu0 0.0
  %1276 = vmatprep.subr.mxu0 0.0
  %1277 = vmatpush1.msra.mxu0 0.0
  %1278 = vmatprep.subr.mxu0 0.0
  %1279 = vmatpush1.msra.mxu0 0.0
  %1280 = vmatprep.subr.mxu0 0.0
  %1281 = vmatpush1.msra.mxu0 0.0
  %1282 = vmatprep.subr.mxu0 0.0
  %1283 = vmatpush1.msra.mxu0 0.0
  %1284 = vmatprep.subr.mxu0 0.0
  %1285 = vmatpush1.msra.mxu0 0.0
  %1286 = vmatprep.subr.mxu0 0.0
  %1287 = vmatpush1.msra.mxu0 0.0
  %1288 = vmatprep.subr.mxu0 0.0
  %1289 = vmatpush1.msra.mxu0 0.0
  %1290 = vmatprep.subr.mxu0 0.0
  %1291 = vmatpush1.msra.mxu0 0.0
  %1292 = vmatprep.mubr.f32.mxu0 0.0
  %v1293 = vand.u32 %v721, 4294901760
  %1294 = vmatmul.mubr.f32.gmra.mrb[0].mxu0 %v1293
  %v1295 = vpop.f32.mrb[0].mxu0
  %v1296 = vadd.f32 %v1177, %v1295
  %v1297 = vpop.f32.mrb[0].mxu0
  %1298 = vdwg.mxu0
  %1299 = vmatprep.subr.mxu0 0.0
  %v1300 = vand.u32 %v722, 4294901760
  %1301 = vmatpush1.msra.mxu0 %v1300
  %1302 = vmatprep.subr.mxu0 0.0
  %v1303 = vand.u32 %v723, 4294901760
  %1304 = vmatpush1.msra.mxu0 %v1303
  %1305 = vmatprep.subr.mxu0 0.0
  %v1306 = vand.u32 %v724, 4294901760
  %1307 = vmatpush1.msra.mxu0 %v1306
  %1308 = vmatprep.subr.mxu0 0.0
  %v1309 = vand.u32 %v725, 4294901760
  %1310 = vmatpush1.msra.mxu0 %v1309
  %1311 = vmatprep.subr.mxu0 0.0
  %v1312 = vand.u32 %v726, 4294901760
  %1313 = vmatpush1.msra.mxu0 %v1312
  %1314 = vmatprep.subr.mxu0 0.0
  %v1315 = vand.u32 %v727, 4294901760
  %1316 = vmatpush1.msra.mxu0 %v1315
  %1317 = vmatprep.subr.mxu0 0.0
  %v1318 = vand.u32 %v728, 4294901760
  %1319 = vmatpush1.msra.mxu0 %v1318
  %1320 = vmatprep.subr.mxu0 0.0
  %v1321 = vand.u32 %v729, 4294901760
  %1322 = vmatpush1.msra.mxu0 %v1321
  %1323 = vmatprep.subr.mxu0 0.0
  %v1324 = vand.u32 %v730, 4294901760
  %1325 = vmatpush1.msra.mxu0 %v1324
  %1326 = vmatprep.subr.mxu0 0.0
  %v1327 = vand.u32 %v731, 4294901760
  %1328 = vmatpush1.msra.mxu0 %v1327
  %1329 = vmatprep.subr.mxu0 0.0
  %v1330 = vand.u32 %v732, 4294901760
  %1331 = vmatpush1.msra.mxu0 %v1330
  %1332 = vmatprep.subr.mxu0 0.0
  %v1333 = vand.u32 %v733, 4294901760
  %1334 = vmatpush1.msra.mxu0 %v1333
  %1335 = vmatprep.subr.mxu0 0.0
  %v1336 = vand.u32 %v734, 4294901760
  %1337 = vmatpush1.msra.mxu0 %v1336
  %1338 = vmatprep.subr.mxu0 0.0
  %v1339 = vand.u32 %v735, 4294901760
  %1340 = vmatpush1.msra.mxu0 %v1339
  %1341 = vmatprep.subr.mxu0 0.0
  %v1342 = vand.u32 %v736, 4294901760
  %1343 = vmatpush1.msra.mxu0 %v1342
  %1344 = vmatprep.subr.mxu0 0.0
  %v1345 = vand.u32 %v737, 4294901760
  %1346 = vmatpush1.msra.mxu0 %v1345
  %1347 = vmatprep.subr.mxu0 0.0
  %1348 = vmatpush1.msra.mxu0 0.0
  %1349 = vmatprep.subr.mxu0 0.0
  %1350 = vmatpush1.msra.mxu0 0.0
  %1351 = vmatprep.subr.mxu0 0.0
  %1352 = vmatpush1.msra.mxu0 0.0
  %1353 = vmatprep.subr.mxu0 0.0
  %1354 = vmatpush1.msra.mxu0 0.0
  %1355 = vmatprep.subr.mxu0 0.0
  %1356 = vmatpush1.msra.mxu0 0.0
  %1357 = vmatprep.subr.mxu0 0.0
  %1358 = vmatpush1.msra.mxu0 0.0
  %1359 = vmatprep.subr.mxu0 0.0
  %1360 = vmatpush1.msra.mxu0 0.0
  %1361 = vmatprep.subr.mxu0 0.0
  %1362 = vmatpush1.msra.mxu0 0.0
  %1363 = vmatprep.subr.mxu0 0.0
  %1364 = vmatpush1.msra.mxu0 0.0
  %1365 = vmatprep.subr.mxu0 0.0
  %1366 = vmatpush1.msra.mxu0 0.0
  %1367 = vmatprep.subr.mxu0 0.0
  %1368 = vmatpush1.msra.mxu0 0.0
  %1369 = vmatprep.subr.mxu0 0.0
  %1370 = vmatpush1.msra.mxu0 0.0
  %1371 = vmatprep.subr.mxu0 0.0
  %1372 = vmatpush1.msra.mxu0 0.0
  %1373 = vmatprep.subr.mxu0 0.0
  %1374 = vmatpush1.msra.mxu0 0.0
  %1375 = vmatprep.subr.mxu0 0.0
  %1376 = vmatpush1.msra.mxu0 0.0
  %1377 = vmatprep.subr.mxu0 0.0
  %1378 = vmatpush1.msra.mxu0 0.0
  %1379 = vmatprep.mubr.f32.mxu0 0.0
  %v1380 = vand.u32 %v721, 4294901760
  %1381 = vmatmul.mubr.f32.gmra.mrb[0].mxu0 %v1380
  %v1382 = vpop.f32.mrb[0].mxu0
  %v1383 = vadd.f32 %v1296, %v1382
  %v1384 = vpop.f32.mrb[0].mxu0
  %1385 = vdwg.mxu0
  %vm1386 = vcmask 15360
  %1387 = vst.msk [vmem:[%s7] sm:$0xff] %vm1386, %v1383
  // Predicated region
  $region30: #{tpu_custom_call.1} parent=0 // pred_check
    _
  $region31: #{tpu_custom_call.1} parent=0 // pred_check_branch
    %1389 = sbr.rel (0) target = $region33
  $region32: #{tpu_custom_call.1} parent=0 // pred_region
    _
  $region33: #{tpu_custom_call.1} parent=0 // pred_fallthru
    _
  // Predicated region
  $region34: #{tpu_custom_call.1} parent=0 // pred_check
    _
  $region35: #{tpu_custom_call.1} parent=0 // pred_check_branch
    %1391 = sbr.rel (0) target = $region37
  $region36: #{tpu_custom_call.1} parent=0 // pred_region
    _
  $region37: #{tpu_custom_call.1} parent=0 // pred_fallthru
    _

</llo_original>
